<compile_context>
chip_gen: v7x
topology: tpu7x:2x2x1
jax: 0.10.0
libtpu: 0.0.40
codegen_flags: <defaults>
</compile_context>

<pallas_src>
import jax
import jax.numpy as jnp
from jax.experimental import pallas as pl
from jax.experimental.pallas import tpu as pltpu


# ----------------------------------------------------------------------------
# Glue: clamped B-spline basis (Cox-de Boor), evaluated at 1-D points.
# ----------------------------------------------------------------------------
def bspline_basis(t, knots, degree):
    """t: (N,) eval points, knots: (n_basis + degree + 1,). Returns (N, n_basis)."""
    t = t[:, None].astype(jnp.float32)
    kn = knots.astype(jnp.float32)
    # Degree-0 intervals are half-open, except the point exactly at the last knot
    # is assigned to the last non-degenerate interval (standard clamped convention).
    in_half_open = (t >= kn[None, :-1]) & (t < kn[None, 1:])
    at_end = (t == kn[-1]) & (kn[None, :-1] < kn[-1]) & (kn[None, 1:] >= kn[-1])
    B = (in_half_open | at_end).astype(jnp.float32)
    for d in range(1, degree + 1):
        d1 = kn[d:-1] - kn[: -d - 1]
        d2 = kn[d + 1:] - kn[1:-d]
        w1 = jnp.where(d1 > 0, (t - kn[None, : -d - 1]) / jnp.where(d1 > 0, d1, 1.0), 0.0)
        w2 = jnp.where(d2 > 0, (kn[None, d + 1:] - t) / jnp.where(d2 > 0, d2, 1.0), 0.0)
        B = w1 * B[:, :-1] + w2 * B[:, 1:]
    return B  # (N, n_basis)


def clamped_knots(n_basis, degree):
    n_interior = n_basis - degree - 1
    interior = jnp.linspace(0.0, 1.0, n_interior + 2)[1:-1] if n_interior > 0 else jnp.zeros((0,))
    return jnp.concatenate(
        [jnp.zeros((degree + 1,)), interior, jnp.ones((degree + 1,))]
    ).astype(jnp.float32)


def _pick_row_tile(H, W):
    """Pick TH: multiple of 8 dividing H (else TH == H), ~1 MiB f32 plane per tile,
    and >= 2 row tiles when possible so the megacore can shard."""
    target = max(8, ((1 << 20) // max(4 * W, 1)) // 8 * 8)   # ~1 MiB per plane
    if H >= 16:
        target = min(target, H // 2)                          # keep >= 2 row tiles
    th = max(8, min(target, H))
    th -= th % 8
    th = max(th, 8)
    while th > 8 and H % th != 0:
        th -= 8
    if H % th != 0:
        th = H   # full-dim block is exempt from the (8, 128) constraint
    return th


# ----------------------------------------------------------------------------
# Fused kernel: phase (matmul + cos/sin, only at b == 0) + complex modulation.
# Refs (after squeezing the batch dim) are all (TH, W) or smaller.
# ----------------------------------------------------------------------------
def _fused_kernel(bx_ref, m_ref, xr_ref, xi_ref, or_ref, oi_ref, cw_ref, sw_ref):
    @pl.when(pl.program_id(1) == 0)          # batch axis is innermost -> runs once
    def _():                                 # per spatial row tile
        phase = jnp.dot(bx_ref[...], m_ref[...], preferred_element_type=jnp.float32)
        cw_ref[...] = jnp.cos(phase)
        sw_ref[...] = jnp.sin(phase)

    cw = cw_ref[...]
    sw = sw_ref[...]
    xr = xr_ref[...]
    xi = xi_ref[...]
    # (cos + i sin) * (xr + i xi)
    or_ref[...] = cw * xr - sw * xi
    oi_ref[...] = sw * xr + cw * xi


def layered_doe_forward(x_re, x_im, bx_layers, c_layers, by_layers):
    """x_re/x_im: (B,H,W) f32; bx_layers: (L,H,K); c_layers: (L,K,K); by_layers: (L,W,K)."""
    B, H, W = x_re.shape
    L, _, K = bx_layers.shape
    LK = L * K

    # ---- wrapper glue (tiny XLA ops): collapse layers into one contraction ----
    # phase = sum_l Bx_l @ C_l @ By_l^T  ==  Bx_cat @ M_cat
    m_layers = jnp.einsum("lkj,lwj->lkw", c_layers, by_layers)       # (L, K, W)
    bx_cat = jnp.transpose(bx_layers, (1, 0, 2)).reshape(H, LK)      # (H, L*K)
    m_cat = m_layers.reshape(LK, W)                                  # (L*K, W)

    TH = _pick_row_tile(H, W)
    grid = (H // TH, B)

    # Explicit VMEM budget (covers v5e's 16 MiB scoped default; capped at v7x's
    # 64 MiB physical).  6 double-buffered (TH, W) planes + 2 scratch planes + glue.
    plane = TH * W * 4
    vmem_need = 2 * 4 * (TH * LK + LK * W) + (4 * 2 + 2) * plane
    vmem_limit = int(min(max(2 * vmem_need, 32 << 20), 64 << 20))

    out_re, out_im = pl.pallas_call(
        _fused_kernel,
        out_shape=(
            jax.ShapeDtypeStruct((B, H, W), jnp.float32),
            jax.ShapeDtypeStruct((B, H, W), jnp.float32),
        ),
        grid_spec=pltpu.PrefetchScalarGridSpec(
            num_scalar_prefetch=0,
            grid=grid,                                                 # batch innermost
            in_specs=[
                pl.BlockSpec((TH, LK), lambda r, b: (r, 0)),           # Bx_cat row tile
                pl.BlockSpec((LK, W), lambda r, b: (0, 0)),            # M_cat (resident)
                pl.BlockSpec((None, TH, W), lambda r, b: (b, r, 0)),   # x real
                pl.BlockSpec((None, TH, W), lambda r, b: (b, r, 0)),   # x imag
            ],
            out_specs=[
                pl.BlockSpec((None, TH, W), lambda r, b: (b, r, 0)),   # out real
                pl.BlockSpec((None, TH, W), lambda r, b: (b, r, 0)),   # out imag
            ],
            scratch_shapes=[
                pltpu.VMEM((TH, W), jnp.float32),    # cos(phase) tile (reused over b)
                pltpu.VMEM((TH, W), jnp.float32),    # sin(phase) tile (reused over b)
            ],
        ),
        compiler_params=pltpu.CompilerParams(
            dimension_semantics=("parallel", "arbitrary"),
            vmem_limit_bytes=vmem_limit,
        ),
    )(bx_cat, m_cat, x_re, x_im)

    return out_re, out_im


# ----------------------------------------------------------------------------
# Pure-JAX reference (matches the PyTorch module semantics).
# ----------------------------------------------------------------------------
def reference_forward(x_cplx, bx_layers, c_layers, by_layers):
    phase = jnp.einsum("lhk,lkm,lwm->hw", bx_layers, c_layers, by_layers)
    Wmod = jnp.exp(1j * phase.astype(jnp.complex64))
    return Wmod[None, :, :] * x_cplx


if __name__ == "__main__":
    # Small shapes: batch=2, grid 16x16, 2 spline layers, degree-3 spline, 8x8 control pts.
    Bsz, H, Wd = 2, 16, 16
    L, degree, K = 2, 3, 8

    key = jax.random.PRNGKey(0)
    k1, k2, k3 = jax.random.split(key, 3)

    # Module "parameters": per-layer control-point grids c_s (deterministic init).
    c_layers = jax.random.normal(k1, (L, K, K), dtype=jnp.float32)

    # Evaluation coordinates self.x / self.y on [0, 1].
    xs = jnp.linspace(0.0, 1.0, H)
    ys = jnp.linspace(0.0, 1.0, Wd)
    knots = clamped_knots(K, degree)   # same knots_x_s / knots_y_s for every layer
    bx = bspline_basis(xs, knots, degree)          # (H, K)
    by = bspline_basis(ys, knots, degree)          # (W, K)
    bx_layers = jnp.broadcast_to(bx, (L, H, K)).astype(jnp.float32)
    by_layers = jnp.broadcast_to(by, (L, Wd, K)).astype(jnp.float32)

    # Complex input field x, carried as re/im float32 planes.
    x_re = jax.random.normal(k2, (Bsz, H, Wd), dtype=jnp.float32)
    x_im = jax.random.normal(k3, (Bsz, H, Wd), dtype=jnp.float32)
    x_cplx = x_re + 1j * x_im

    out_re, out_im = jax.jit(layered_doe_forward)(x_re, x_im, bx_layers, c_layers, by_layers)
    jax.block_until_ready((out_re, out_im))

    ref = reference_forward(x_cplx, bx_layers, c_layers, by_layers)
    assert jnp.allclose(out_re, jnp.real(ref), atol=1e-4, rtol=1e-4)
    assert jnp.allclose(out_im, jnp.imag(ref), atol=1e-4, rtol=1e-4)

    print("KERNEL_OK")
</pallas_src>

<mosaic_0001>
module attributes {stable_mosaic.version = 11 : i64} {
  func.func @_fused_kernel(%arg0: i32, %arg1: i32, %arg2: memref<8x16xf32, #tpu.memory_space<vmem>>, %arg3: memref<16x16xf32, #tpu.memory_space<vmem>>, %arg4: memref<1x8x16xf32, #tpu.memory_space<vmem>>, %arg5: memref<1x8x16xf32, #tpu.memory_space<vmem>>, %arg6: memref<1x8x16xf32, #tpu.memory_space<vmem>>, %arg7: memref<1x8x16xf32, #tpu.memory_space<vmem>>, %arg8: memref<8x16xf32, #tpu.memory_space<vmem>>, %arg9: memref<8x16xf32, #tpu.memory_space<vmem>>) attributes {dimension_semantics = [#tpu.dimension_semantics<parallel>, #tpu.dimension_semantics<arbitrary>], iteration_bounds = array<i64: 2, 2>, scalar_prefetch = 0 : i64, scratch_operands = 2 : i64, tpu.core_type = #tpu.core_type<tc>, window_params = [{transform_indices = @transform_0, window_bounds = array<i64: 8, 16>}, {pipeline_mode = #tpu.pipeline_mode<synchronous>, transform_indices = @transform_1, window_bounds = array<i64: 16, 16>}, {transform_indices = @transform_2, window_bounds = array<i64: 1, 8, 16>}, {transform_indices = @transform_3, window_bounds = array<i64: 1, 8, 16>}, {transform_indices = @transform_4, window_bounds = array<i64: 1, 8, 16>}, {transform_indices = @transform_5, window_bounds = array<i64: 1, 8, 16>}]} {
    %c0_i32 = arith.constant 0 : i32
    %0 = arith.cmpi eq, %arg1, %c0_i32 : i32
    %1 = arith.extui %0 : i1 to i32
    %c0_i32_0 = arith.constant 0 : i32
    %2 = arith.cmpi ne, %1, %c0_i32_0 : i32
    scf.if %2 {
      %c0_16 = arith.constant 0 : index
      %c0_17 = arith.constant 0 : index
      %21 = vector.load %arg2[%c0_16, %c0_17] : memref<8x16xf32, #tpu.memory_space<vmem>>, vector<8x16xf32>
      %c0_18 = arith.constant 0 : index
      %c0_19 = arith.constant 0 : index
      %22 = vector.load %arg3[%c0_18, %c0_19] : memref<16x16xf32, #tpu.memory_space<vmem>>, vector<16x16xf32>
      %cst = arith.constant dense<0.000000e+00> : vector<8x16xf32>
      %23 = tpu.matmul %21, %22, %cst {dimension_numbers = #tpu.dot_dimension_numbers<[1], [0], [0], [1], [0, 0, 1, 1], [], []>} : vector<8x16xf32>, vector<16x16xf32>, vector<8x16xf32> -> vector<8x16xf32>
      %24 = math.cos %23 : vector<8x16xf32>
      %c0_20 = arith.constant 0 : index
      %c0_21 = arith.constant 0 : index
      %25 = vector.load %arg8[%c0_20, %c0_21] : memref<8x16xf32, #tpu.memory_space<vmem>>, vector<8x16xf32>
      tpu.vector_store %arg8[%c0_20, %c0_21], %24 {strides = array<i32>} : memref<8x16xf32, #tpu.memory_space<vmem>>, vector<8x16xf32>,
      %26 = math.sin %23 : vector<8x16xf32>
      %c0_22 = arith.constant 0 : index
      %c0_23 = arith.constant 0 : index
      %27 = vector.load %arg9[%c0_22, %c0_23] : memref<8x16xf32, #tpu.memory_space<vmem>>, vector<8x16xf32>
      tpu.vector_store %arg9[%c0_22, %c0_23], %26 {strides = array<i32>} : memref<8x16xf32, #tpu.memory_space<vmem>>, vector<8x16xf32>,
    } else {
    }
    %c0 = arith.constant 0 : index
    %c0_1 = arith.constant 0 : index
    %3 = vector.load %arg8[%c0, %c0_1] : memref<8x16xf32, #tpu.memory_space<vmem>>, vector<8x16xf32>
    %c0_2 = arith.constant 0 : index
    %c0_3 = arith.constant 0 : index
    %4 = vector.load %arg9[%c0_2, %c0_3] : memref<8x16xf32, #tpu.memory_space<vmem>>, vector<8x16xf32>
    %c0_4 = arith.constant 0 : index
    %c0_5 = arith.constant 0 : index
    %c0_6 = arith.constant 0 : index
    %5 = vector.load %arg4[%c0_4, %c0_5, %c0_6] : memref<1x8x16xf32, #tpu.memory_space<vmem>>, vector<1x8x16xf32>
    %6 = vector.shape_cast %5 : vector<1x8x16xf32> to vector<8x16xf32>
    %c0_7 = arith.constant 0 : index
    %c0_8 = arith.constant 0 : index
    %c0_9 = arith.constant 0 : index
    %7 = vector.load %arg5[%c0_7, %c0_8, %c0_9] : memref<1x8x16xf32, #tpu.memory_space<vmem>>, vector<1x8x16xf32>
    %8 = vector.shape_cast %7 : vector<1x8x16xf32> to vector<8x16xf32>
    %9 = arith.mulf %3, %6 : vector<8x16xf32>
    %10 = arith.mulf %4, %8 : vector<8x16xf32>
    %11 = arith.subf %9, %10 : vector<8x16xf32>
    %c0_10 = arith.constant 0 : index
    %c0_11 = arith.constant 0 : index
    %c0_12 = arith.constant 0 : index
    %12 = vector.load %arg6[%c0_10, %c0_11, %c0_12] : memref<1x8x16xf32, #tpu.memory_space<vmem>>, vector<1x8x16xf32>
    %13 = vector.shape_cast %12 : vector<1x8x16xf32> to vector<8x16xf32>
    %14 = vector.shape_cast %11 : vector<8x16xf32> to vector<1x8x16xf32>
    tpu.vector_store %arg6[%c0_10, %c0_11, %c0_12], %14 {strides = array<i32>} : memref<1x8x16xf32, #tpu.memory_space<vmem>>, vector<1x8x16xf32>,
    %15 = arith.mulf %4, %6 : vector<8x16xf32>
    %16 = arith.mulf %3, %8 : vector<8x16xf32>
    %17 = arith.addf %15, %16 : vector<8x16xf32>
    %c0_13 = arith.constant 0 : index
    %c0_14 = arith.constant 0 : index
    %c0_15 = arith.constant 0 : index
    %18 = vector.load %arg7[%c0_13, %c0_14, %c0_15] : memref<1x8x16xf32, #tpu.memory_space<vmem>>, vector<1x8x16xf32>
    %19 = vector.shape_cast %18 : vector<1x8x16xf32> to vector<8x16xf32>
    %20 = vector.shape_cast %17 : vector<8x16xf32> to vector<1x8x16xf32>
    tpu.vector_store %arg7[%c0_13, %c0_14, %c0_15], %20 {strides = array<i32>} : memref<1x8x16xf32, #tpu.memory_space<vmem>>, vector<1x8x16xf32>,
    return
  }
  func.func @transform_0(%arg0: i32, %arg1: i32) -> (i32, i32) {
    %c0_i32 = arith.constant 0 : i32
    %c0_i32_0 = arith.constant 0 : i32
    return %arg0, %c0_i32 : i32, i32
  }
  func.func @transform_1(%arg0: i32, %arg1: i32) -> (i32, i32) {
    %c0_i32 = arith.constant 0 : i32
    %c0_i32_0 = arith.constant 0 : i32
    %c0_i32_1 = arith.constant 0 : i32
    return %c0_i32, %c0_i32_0 : i32, i32
  }
  func.func @transform_2(%arg0: i32, %arg1: i32) -> (i32, i32, i32) {
    %c0_i32 = arith.constant 0 : i32
    %c0_i32_0 = arith.constant 0 : i32
    return %arg1, %arg0, %c0_i32 : i32, i32, i32
  }
  func.func @transform_3(%arg0: i32, %arg1: i32) -> (i32, i32, i32) {
    %c0_i32 = arith.constant 0 : i32
    %c0_i32_0 = arith.constant 0 : i32
    return %arg1, %arg0, %c0_i32 : i32, i32, i32
  }
  func.func @transform_4(%arg0: i32, %arg1: i32) -> (i32, i32, i32) {
    %c0_i32 = arith.constant 0 : i32
    %c0_i32_0 = arith.constant 0 : i32
    return %arg1, %arg0, %c0_i32 : i32, i32, i32
  }
  func.func @transform_5(%arg0: i32, %arg1: i32) -> (i32, i32, i32) {
    %c0_i32 = arith.constant 0 : i32
    %c0_i32_0 = arith.constant 0 : i32
    return %arg1, %arg0, %c0_i32 : i32, i32, i32
  }
}

</mosaic_0001>

<llo_original>
// kernel: layered_doe_forward.1
$region0: #{layered_doe_forward.1}
  #allocation0 [shape = 'u32[]', space=smem, size = 0x4, offset = 0x4, fixed_abs, tag = 'smem constant byte address 0x4 - core index']
  #allocation1 [shape = 'u32[144,128]{1,0:T(1,128)}', space=vmem, size = 0x12000, scoped, tag = 'internal scratch']
  #allocation2 [shape = 'f32[8,16]{1,0:T(8,128)}', space=vmem, size = 0x1000, scoped, tag = 'scratch operand']
  #allocation3 [shape = 'f32[8,16]{1,0:T(8,128)}', space=vmem, size = 0x1000, scoped, tag = 'scratch operand']
  %s0 = inlined_call_operand.vmem [shape: f32[16,16], index: 0, kind: input, shape index: {}]
  %s1 = inlined_call_operand.vmem [shape: f32[16,16], index: 1, kind: input, shape index: {}]
  %s2 = inlined_call_operand.vmem [shape: f32[2,16,16], index: 2, kind: input, shape index: {}]
  %s3 = inlined_call_operand.vmem [shape: f32[2,16,16], index: 3, kind: input, shape index: {}]
  %s4 = inlined_call_operand.hbm [shape: f32[2,16,16], index: 4, kind: output, shape index: {0}]
  %s5 = inlined_call_operand.hbm [shape: f32[2,16,16], index: 5, kind: output, shape index: {1}]
  %6 = xla_tuple %s4, %s5
  %s7 = sld [smem:[#allocation0]]
  $region61: #{layered_doe_forward.1} parent=0
    _
  %s9 = ssub.s32 1, %s7
  %s10 = scalar_select 0, %s9, %s7
  $region1: #{layered_doe_forward.1} parent=0
    #allocation4 [shape = 'u8[8192]{0}', space=vmem, size = 0x2000, scoped, tag = 'output window, operand 0']
    #allocation5 [shape = 's32[2]{0}', space=sflag, size = 0x8, scoped, tag = 'scoped memory for layered_doe_forward.1']
    #allocation6 [shape = 'u8[8192]{0}', space=vmem, size = 0x2000, scoped, tag = 'output window, operand 1']
    #allocation7 [shape = 's32[2]{0}', space=sflag, size = 0x8, scoped, tag = 'scoped memory for layered_doe_forward.1']
    %11 = vsyncpa [#allocation5], 0
    %s12 = scalar_lea.sflag [#allocation5], 1
    %13 = vsyncpa %s12, 0
    %14 = vsyncpa [#allocation7], 0
    %s15 = scalar_lea.sflag [#allocation7], 1
    %16 = vsyncpa %s15, 0
    loop: start=0, step=1, limit=6
    $region2: #{layered_doe_forward.1} parent=1 // loop_pre_header
      _
    $region3: #{layered_doe_forward.1} parent=1 // loop_header
      %s18 = sphi 0, %s22
      %p19 = scmp.ge.s32.totalorder %s18, 6
      %s25 = sphi 0, %s37
      %s26 = sphi 0, %s33
      %s27 = sphi 0, %s25
      %s28 = sphi 0, %s26
      %s29 = sphi 0, %s27
      %s30 = sphi 0, %s28
      %s40 = sphi 0, %s42
      %s43 = sphi 0, %s40
      %s44 = sphi 0, %s43
      %s60 = sphi 0, %s44
      %s64 = sphi 0, %s64
      %s66 = sphi 0, %s64
      %s67 = sphi 0, %s66
      %s81 = sphi 0, %s67
      %s89 = sphi 0, %s91
      %s92 = sphi 0, %s89
      %s93 = sphi 0, %s92
      %s109 = sphi 0, %s93
      %s117 = sphi 0, %s119
      %s120 = sphi 0, %s117
      %s121 = sphi 0, %s120
      %s137 = sphi 0, %s121
      %s145 = sphi 0, %s147
      %s148 = sphi 0, %s145
      %s149 = sphi 0, %s148
      %s165 = sphi 0, %s149
      %s173 = sphi 0, %s175
      %s176 = sphi 0, %s173
      %s177 = sphi 0, %s176
      %s193 = sphi 0, %s177
    $region4: #{layered_doe_forward.1} parent=1 // loop_header_branch
      %21 = sbr.rel (%p19) target = $region8
    $region5: #{layered_doe_forward.1} parent=1 // loop_body
      %s23 = ssub.s32 %s18, 1
      %s24 = ssub.s32 %s18, 2
      %s31 = sadd.s32 1, %s26
      %p32 = scmp.ge.s32.totalorder %s31, 2
      %s33 = scalar_select %p32, 0, %s31
      %s34 = sadd.s32 1, %s25
      %s35 = scalar_select %p32, %s34, %s25
      %p36 = scmp.ge.s32.totalorder %s35, 2
      %s37 = scalar_select %p36, 0, %s35
      %s38 = ssub.s32 %s25, %s37
      %p39 = scmp.eq.s32.totalorder %s38, 0
      %s41 = sadd.s32 %s40, 1
      %s42 = scalar_select %p39, %s40, %s41
      %p45 = pneg %p39
      %p46 = scmp.eq.s32.totalorder %s18, 3
      %p47 = por %p45, %p46
      %p48 = scmp.ne.s32.totalorder %s40, %s43
      %p49 = scmp.eq.s32.totalorder %s18, 0
      %p50 = por %p48, %p49
      %p51 = scmp.ne.s32.totalorder %s40, %s43
      %p52 = scmp.eq.s32.totalorder %s23, 3
      %p53 = por %p51, %p52
      %p54 = scmp.ne.s32.totalorder %s43, %s44
      %p55 = scmp.eq.s32.totalorder %s23, 0
      %p56 = por %p54, %p55
      %p57 = scmp.ne.s32.totalorder %s43, %s44
      %p58 = scmp.eq.s32.totalorder %s24, 3
      %p59 = por %p57, %p58
      %p61 = scmp.ne.s32.totalorder %s44, %s60
      %p62 = scmp.eq.s32.totalorder %s24, 0
      %p63 = por %p61, %p62
      %s65 = sadd.s32 %s64, 1
      %p68 = scmp.eq.s32.totalorder %s18, 3
      %p69 = scmp.ne.s32.totalorder %s64, %s66
      %p70 = scmp.eq.s32.totalorder %s18, 0
      %p71 = por %p69, %p70
      %p72 = scmp.ne.s32.totalorder %s64, %s66
      %p73 = scmp.eq.s32.totalorder %s23, 3
      %p74 = por %p72, %p73
      %p75 = scmp.ne.s32.totalorder %s66, %s67
      %p76 = scmp.eq.s32.totalorder %s23, 0
      %p77 = por %p75, %p76
      %p78 = scmp.ne.s32.totalorder %s66, %s67
      %p79 = scmp.eq.s32.totalorder %s24, 3
      %p80 = por %p78, %p79
      %p82 = scmp.ne.s32.totalorder %s67, %s81
      %p83 = scmp.eq.s32.totalorder %s24, 0
      %p84 = por %p82, %p83
      %s85 = ssub.s32 %s26, %s33
      %s86 = ssub.s32 %s25, %s37
      %s87 = sor.u32 %s85, %s86
      %p88 = scmp.eq.s32.totalorder %s87, 0
      %s90 = sadd.s32 %s89, 1
      %s91 = scalar_select %p88, %s89, %s90
      %p94 = pneg %p88
      %p95 = scmp.eq.s32.totalorder %s18, 3
      %p96 = por %p94, %p95
      %p97 = scmp.ne.s32.totalorder %s89, %s92
      %p98 = scmp.eq.s32.totalorder %s18, 0
      %p99 = por %p97, %p98
      %p100 = scmp.ne.s32.totalorder %s89, %s92
      %p101 = scmp.eq.s32.totalorder %s23, 3
      %p102 = por %p100, %p101
      %p103 = scmp.ne.s32.totalorder %s92, %s93
      %p104 = scmp.eq.s32.totalorder %s23, 0
      %p105 = por %p103, %p104
      %p106 = scmp.ne.s32.totalorder %s92, %s93
      %p107 = scmp.eq.s32.totalorder %s24, 3
      %p108 = por %p106, %p107
      %p110 = scmp.ne.s32.totalorder %s93, %s109
      %p111 = scmp.eq.s32.totalorder %s24, 0
      %p112 = por %p110, %p111
      %s113 = ssub.s32 %s26, %s33
      %s114 = ssub.s32 %s25, %s37
      %s115 = sor.u32 %s113, %s114
      %p116 = scmp.eq.s32.totalorder %s115, 0
      %s118 = sadd.s32 %s117, 1
      %s119 = scalar_select %p116, %s117, %s118
      %p122 = pneg %p116
      %p123 = scmp.eq.s32.totalorder %s18, 3
      %p124 = por %p122, %p123
      %p125 = scmp.ne.s32.totalorder %s117, %s120
      %p126 = scmp.eq.s32.totalorder %s18, 0
      %p127 = por %p125, %p126
      %p128 = scmp.ne.s32.totalorder %s117, %s120
      %p129 = scmp.eq.s32.totalorder %s23, 3
      %p130 = por %p128, %p129
      %p131 = scmp.ne.s32.totalorder %s120, %s121
      %p132 = scmp.eq.s32.totalorder %s23, 0
      %p133 = por %p131, %p132
      %p134 = scmp.ne.s32.totalorder %s120, %s121
      %p135 = scmp.eq.s32.totalorder %s24, 3
      %p136 = por %p134, %p135
      %p138 = scmp.ne.s32.totalorder %s121, %s137
      %p139 = scmp.eq.s32.totalorder %s24, 0
      %p140 = por %p138, %p139
      %s141 = ssub.s32 %s26, %s33
      %s142 = ssub.s32 %s25, %s37
      %s143 = sor.u32 %s141, %s142
      %p144 = scmp.eq.s32.totalorder %s143, 0
      %s146 = sadd.s32 %s145, 1
      %s147 = scalar_select %p144, %s145, %s146
      %p150 = pneg %p144
      %p151 = scmp.eq.s32.totalorder %s18, 3
      %p152 = por %p150, %p151
      %p153 = scmp.ne.s32.totalorder %s145, %s148
      %p154 = scmp.eq.s32.totalorder %s18, 0
      %p155 = por %p153, %p154
      %p156 = scmp.ne.s32.totalorder %s145, %s148
      %p157 = scmp.eq.s32.totalorder %s23, 3
      %p158 = por %p156, %p157
      %p159 = scmp.ne.s32.totalorder %s148, %s149
      %p160 = scmp.eq.s32.totalorder %s23, 0
      %p161 = por %p159, %p160
      %p162 = scmp.ne.s32.totalorder %s148, %s149
      %p163 = scmp.eq.s32.totalorder %s24, 3
      %p164 = por %p162, %p163
      %p166 = scmp.ne.s32.totalorder %s149, %s165
      %p167 = scmp.eq.s32.totalorder %s24, 0
      %p168 = por %p166, %p167
      %s169 = ssub.s32 %s26, %s33
      %s170 = ssub.s32 %s25, %s37
      %s171 = sor.u32 %s169, %s170
      %p172 = scmp.eq.s32.totalorder %s171, 0
      %s174 = sadd.s32 %s173, 1
      %s175 = scalar_select %p172, %s173, %s174
      %p178 = pneg %p172
      %p179 = scmp.eq.s32.totalorder %s18, 3
      %p180 = por %p178, %p179
      %p181 = scmp.ne.s32.totalorder %s173, %s176
      %p182 = scmp.eq.s32.totalorder %s18, 0
      %p183 = por %p181, %p182
      %p184 = scmp.ne.s32.totalorder %s173, %s176
      %p185 = scmp.eq.s32.totalorder %s23, 3
      %p186 = por %p184, %p185
      %p187 = scmp.ne.s32.totalorder %s176, %s177
      %p188 = scmp.eq.s32.totalorder %s23, 0
      %p189 = por %p187, %p188
      %p190 = scmp.ne.s32.totalorder %s176, %s177
      %p191 = scmp.eq.s32.totalorder %s24, 3
      %p192 = por %p190, %p191
      %p194 = scmp.ne.s32.totalorder %s177, %s193
      %p195 = scmp.eq.s32.totalorder %s24, 0
      %p196 = por %p194, %p195
      %p197 = scmp.le.s32.totalorder 1, %s18
      %p198 = scmp.lt.s32.totalorder %s18, 5
      %p199 = pnand %p197, %p198
      %p200 = pneg %p199
      // Predicated region
      $region9: #{layered_doe_forward.1} parent=5 // pred_check
        _
      $region10: #{layered_doe_forward.1} parent=5 // pred_check_branch
        %202 = sbr.rel (%p199) target = $region12
      $region11: #{layered_doe_forward.1} parent=5 // pred_region
        %s203 = ssub.s32 %s18, 1
        // Predicated region
        $region13: #{layered_doe_forward.1} parent=11 // pred_check
          %p204 = pneg %p77
        $region14: #{layered_doe_forward.1} parent=11 // pred_check_branch
          %206 = sbr.rel (%p204) target = $region16
        $region15: #{layered_doe_forward.1} parent=11 // pred_region
          _
        $region16: #{layered_doe_forward.1} parent=11 // pred_fallthru
          _
      $region12: #{layered_doe_forward.1} parent=5 // pred_fallthru
        _
      %p207 = scmp.lt.s32.totalorder %s18, 4
      // Predicated region
      $region17: #{layered_doe_forward.1} parent=5 // pred_check
        %p208 = pneg %p207
      $region18: #{layered_doe_forward.1} parent=5 // pred_check_branch
        %210 = sbr.rel (%p208) target = $region20
      $region19: #{layered_doe_forward.1} parent=5 // pred_region
        // Predicated region
        $region21: #{layered_doe_forward.1} parent=19 // pred_check
          %p211 = pneg %p50
        $region22: #{layered_doe_forward.1} parent=19 // pred_check_branch
          %213 = sbr.rel (%p211) target = $region24
        $region23: #{layered_doe_forward.1} parent=19 // pred_region
          %p214 = scmp.lt.s32.totalorder %s25, 1
          %s215 = scalar_select %p214, %s25, 1
          %s216 = smul.addr %s215, 8
          %s217 = scalar_lea.vmem %s0, %s216
        $region24: #{layered_doe_forward.1} parent=19 // pred_fallthru
          _
        // Predicated region
        $region25: #{layered_doe_forward.1} parent=19 // pred_check
          %p218 = pneg %p99
        $region26: #{layered_doe_forward.1} parent=19 // pred_check_branch
          %220 = sbr.rel (%p218) target = $region28
        $region27: #{layered_doe_forward.1} parent=19 // pred_region
          %p221 = scmp.lt.s32.totalorder %s26, 1
          %s222 = scalar_select %p221, %s26, 1
          %p223 = scmp.lt.s32.totalorder %s25, 1
          %s224 = scalar_select %p223, %s25, 1
          %s225 = smul.addr %s222, 2
          %s226 = sadd.s32 %s224, %s225
          %s227 = smul.addr %s226, 8
          %s228 = scalar_lea.vmem %s2, %s227
        $region28: #{layered_doe_forward.1} parent=19 // pred_fallthru
          _
        // Predicated region
        $region29: #{layered_doe_forward.1} parent=19 // pred_check
          %p229 = pneg %p127
        $region30: #{layered_doe_forward.1} parent=19 // pred_check_branch
          %231 = sbr.rel (%p229) target = $region32
        $region31: #{layered_doe_forward.1} parent=19 // pred_region
          %p232 = scmp.lt.s32.totalorder %s26, 1
          %s233 = scalar_select %p232, %s26, 1
          %p234 = scmp.lt.s32.totalorder %s25, 1
          %s235 = scalar_select %p234, %s25, 1
          %s236 = smul.addr %s233, 2
          %s237 = sadd.s32 %s235, %s236
          %s238 = smul.addr %s237, 8
          %s239 = scalar_lea.vmem %s3, %s238
        $region32: #{layered_doe_forward.1} parent=19 // pred_fallthru
          _
      $region20: #{layered_doe_forward.1} parent=5 // pred_fallthru
        _
      %p240 = scmp.le.s32.totalorder 1, %s18
      %p241 = scmp.lt.s32.totalorder %s18, 5
      %p242 = pnand %p240, %p241
      %p243 = pneg %p242
      // Predicated region
      $region33: #{layered_doe_forward.1} parent=5 // pred_check
        _
      $region34: #{layered_doe_forward.1} parent=5 // pred_check_branch
        %245 = sbr.rel (%p242) target = $region36
      $region35: #{layered_doe_forward.1} parent=5 // pred_region
        %s246 = ssub.s32 %s18, 1
        %p247 = scmp.lt.s32.totalorder %s27, 1
        %s248 = scalar_select %p247, %s27, 1
        %s249 = smul.addr %s248, 8
        %s250 = scalar_lea.vmem %s0, %s249
        %p251 = pneg %p56
        %p252 = pneg %p53
        %p253 = pneg %p77
        %p254 = pneg %p74
        %p255 = scmp.lt.s32.totalorder %s28, 1
        %s256 = scalar_select %p255, %s28, 1
        %p257 = scmp.lt.s32.totalorder %s27, 1
        %s258 = scalar_select %p257, %s27, 1
        %s259 = smul.addr %s256, 2
        %s260 = sadd.s32 %s258, %s259
        %s261 = smul.addr %s260, 8
        %s262 = scalar_lea.vmem %s2, %s261
        %p263 = pneg %p105
        %p264 = pneg %p102
        %p265 = scmp.lt.s32.totalorder %s28, 1
        %s266 = scalar_select %p265, %s28, 1
        %p267 = scmp.lt.s32.totalorder %s27, 1
        %s268 = scalar_select %p267, %s27, 1
        %s269 = smul.addr %s266, 2
        %s270 = sadd.s32 %s268, %s269
        %s271 = smul.addr %s270, 8
        %s272 = scalar_lea.vmem %s3, %s271
        %p273 = pneg %p133
        %p274 = pneg %p130
        %p275 = pneg %p161
        %p276 = pneg %p158
        %s277 = sand.u32 %s148, 1
        %s278 = scalar_lea.sflag [#allocation5], %s277
        %s279 = sand.u32 %s148, 1
        %s280 = smul.addr %s279, 8
        %s281 = scalar_lea.vmem [#allocation4], %s280
        %p282 = pneg %p189
        %p283 = pneg %p186
        %s284 = sand.u32 %s176, 1
        %s285 = scalar_lea.sflag [#allocation7], %s284
        %s286 = sand.u32 %s176, 1
        %s287 = smul.addr %s286, 8
        %s288 = scalar_lea.vmem [#allocation6], %s287
        %p289 = scmp.lt.s32.totalorder %s27, 1
        %s290 = scalar_select %p289, %s27, 1
        %s291 = smul.addr %s290, 8
        %s292 = scalar_lea.vmem %s0, %s291
        %p293 = scmp.lt.s32.totalorder %s28, 1
        %s294 = scalar_select %p293, %s28, 1
        %p295 = scmp.lt.s32.totalorder %s27, 1
        %s296 = scalar_select %p295, %s27, 1
        %s297 = smul.addr %s294, 2
        %s298 = sadd.s32 %s296, %s297
        %s299 = smul.addr %s298, 8
        %s300 = scalar_lea.vmem %s2, %s299
        %p301 = scmp.lt.s32.totalorder %s28, 1
        %s302 = scalar_select %p301, %s28, 1
        %p303 = scmp.lt.s32.totalorder %s27, 1
        %s304 = scalar_select %p303, %s27, 1
        %s305 = smul.addr %s302, 2
        %s306 = sadd.s32 %s304, %s305
        %s307 = smul.addr %s306, 8
        %s308 = scalar_lea.vmem %s3, %s307
        %p309 = scmp.eq.s32.totalorder %s28, 0
        // Predicated region
        $region37: #{layered_doe_forward.1} parent=35 // pred_check
          %p310 = pneg %p309
        $region38: #{layered_doe_forward.1} parent=35 // pred_check_branch
          %312 = sbr.rel (%p310) target = $region40
        $region39: #{layered_doe_forward.1} parent=35 // pred_region
          %v313 = vld [vmem:[%s292] sm:$0xff]
          %v314 = vld [vmem:[%s1] sm:$0xff]
          %v315 = vld [vmem:[%s1 + $0x8] sm:$0xff]
          %vm316 = vcmask 130048
          %v318 = vsel %vm316, %v313, 0
          %320 = vmatprep.subr.mxu0 0.0
          %321 = vmatpush1.msra.mxu0 %v314
          %322 = vmatprep.subr.mxu0 0.0
          %323 = vmatpush1.msra.mxu0 %v315
          %324 = vmatprep.subr.mxu0 0.0
          %325 = vmatpush1.msra.mxu0 0.0
          %326 = vmatprep.subr.mxu0 0.0
          %327 = vmatpush1.msra.mxu0 0.0
          %328 = vmatprep.subr.mxu0 0.0
          %329 = vmatpush1.msra.mxu0 0.0
          %330 = vmatprep.subr.mxu0 0.0
          %331 = vmatpush1.msra.mxu0 0.0
          %332 = vmatprep.subr.mxu0 0.0
          %333 = vmatpush1.msra.mxu0 0.0
          %334 = vmatprep.subr.mxu0 0.0
          %335 = vmatpush1.msra.mxu0 0.0
          %336 = vmatprep.subr.mxu0 0.0
          %337 = vmatpush1.msra.mxu0 0.0
          %338 = vmatprep.subr.mxu0 0.0
          %339 = vmatpush1.msra.mxu0 0.0
          %340 = vmatprep.subr.mxu0 0.0
          %341 = vmatpush1.msra.mxu0 0.0
          %342 = vmatprep.subr.mxu0 0.0
          %343 = vmatpush1.msra.mxu0 0.0
          %344 = vmatprep.subr.mxu0 0.0
          %345 = vmatpush1.msra.mxu0 0.0
          %346 = vmatprep.subr.mxu0 0.0
          %347 = vmatpush1.msra.mxu0 0.0
          %348 = vmatprep.subr.mxu0 0.0
          %349 = vmatpush1.msra.mxu0 0.0
          %350 = vmatprep.subr.mxu0 0.0
          %351 = vmatpush1.msra.mxu0 0.0
          %352 = vmatprep.subr.mxu0 0.0
          %353 = vmatpush1.msra.mxu0 0.0
          %354 = vmatprep.subr.mxu0 0.0
          %355 = vmatpush1.msra.mxu0 0.0
          %356 = vmatprep.subr.mxu0 0.0
          %357 = vmatpush1.msra.mxu0 0.0
          %358 = vmatprep.subr.mxu0 0.0
          %359 = vmatpush1.msra.mxu0 0.0
          %360 = vmatprep.subr.mxu0 0.0
          %361 = vmatpush1.msra.mxu0 0.0
          %362 = vmatprep.subr.mxu0 0.0
          %363 = vmatpush1.msra.mxu0 0.0
          %364 = vmatprep.subr.mxu0 0.0
          %365 = vmatpush1.msra.mxu0 0.0
          %366 = vmatprep.subr.mxu0 0.0
          %367 = vmatpush1.msra.mxu0 0.0
          %368 = vmatprep.subr.mxu0 0.0
          %369 = vmatpush1.msra.mxu0 0.0
          %370 = vmatprep.subr.mxu0 0.0
          %371 = vmatpush1.msra.mxu0 0.0
          %372 = vmatprep.subr.mxu0 0.0
          %373 = vmatpush1.msra.mxu0 0.0
          %374 = vmatprep.subr.mxu0 0.0
          %375 = vmatpush1.msra.mxu0 0.0
          %376 = vmatprep.subr.mxu0 0.0
          %377 = vmatpush1.msra.mxu0 0.0
          %378 = vmatprep.subr.mxu0 0.0
          %379 = vmatpush1.msra.mxu0 0.0
          %380 = vmatprep.subr.mxu0 0.0
          %381 = vmatpush1.msra.mxu0 0.0
          %382 = vmatprep.subr.mxu0 0.0
          %383 = vmatpush1.msra.mxu0 0.0
          %384 = vmatprep.mubr.f32.mxu0 0.0
          %385 = vmatmul.mubr.f32.gmra.mrb[0].mxu0 %v318
          %v386 = vpop.f32.mrb[0].mxu0
          %v387 = vadd.f32 0.0, %v386
          %v388 = vpop.f32.mrb[0].mxu0
          %389 = vdwg.mxu0
          %v390 = vand.u32 2147483647, %v387
          %vm391 = vcmp.le.f32.partialorder %v390, 0.7853982
          %vm392 = vcmp.lt.s32.totalorder %v387, 0
          %v393 = vand.u32 %v387, 2139095040
          %v394 = vshrl.u32 %v393, 23
          %v395 = vsub.s32 %v394, 127
          %v396 = vand.u32 2147483647, %v387
          %v397 = vand.u32 %v396, 8388607
          %v398 = vor.u32 %v397, 8388608
          %v399 = vsub.s32 0, %v398
          %v400 = vadd.s32 %v395, 1
          %vm401 = vcmp.gt.s32.totalorder %v400, 0
          %v402 = vsel %vm401, %v400, 0
          %v403 = vshrl.u32 %v402, 5
          %v404 = vand.u32 %v402, 31
          %v405 = vsub.s32 32, %v404
          %v406 = vshrl.u32 683565275, %v405
          %v407 = vshll.u32 683565275, %v404
          %v408 = vshrl.u32 2475754826, %v405
          %v409 = vor.u32 %v407, %v408
          %v410 = vshll.u32 2475754826, %v404
          %v411 = vshrl.u32 2131351028, %v405
          %v412 = vor.u32 %v410, %v411
          %v413 = vshll.u32 2131351028, %v404
          %v414 = vshrl.u32 2102212464, %v405
          %v415 = vor.u32 %v413, %v414
          %v416 = vshll.u32 2102212464, %v404
          %v417 = vshrl.u32 920167782, %v405
          %v418 = vor.u32 %v416, %v417
          %v419 = vshll.u32 920167782, %v404
          %v420 = vshrl.u32 1326507024, %v405
          %v421 = vor.u32 %v419, %v420
          %vm422 = vcmp.lt.s32.totalorder %v403, 1
          %vm423 = vcmp.lt.s32.totalorder %v403, 2
          %vm424 = vcmp.lt.s32.totalorder %v403, 3
          %vm425 = vcmp.lt.s32.totalorder %v403, 4
          %v426 = vsel %vm422, %v406, %v409
          %v427 = vsel %vm425, %v415, 2102212464
          %v428 = vsel %vm424, %v412, %v427
          %v429 = vsel %vm423, %v426, %v428
          %v430 = vsel %vm422, %v409, %v412
          %v431 = vsel %vm425, %v418, 920167782
          %v432 = vsel %vm424, %v415, %v431
          %v433 = vsel %vm423, %v430, %v432
          %v434 = vsel %vm422, %v412, %v415
          %v435 = vsel %vm425, %v421, 1326507024
          %v436 = vsel %vm424, %v418, %v435
          %v437 = vsel %vm423, %v434, %v436
          %v438 = vshll.u32 %v398, 8
          %v439 = vmul.u32.u64.compose %v438, %v437
          %v440 = vextract.low.u32 %v439
          %v441 = vextract.high.u32 %v439
          %v442 = vmul.u32.u64.compose %v438, %v433
          %v443 = vextract.low.u32 %v442
          %v444 = vextract.high.u32 %v442
          %v445 = vmul.u32 %v438, %v429
          %v446 = vadd.s32 %v441, %v443
          %vm447 = vc.u32 %v441, %v443
          %v448 = vadd.s32 %v444, 1
          %v449 = vsel %vm447, %v448, %v444
          %v450 = vadd.s32 %v445, %v449
          %v451 = vadd.s32 %v450, 536870912
          %v452 = vshrl.u32 %v451, 30
          %v453 = vshll.u32 %v452, 30
          %v454 = vsub.s32 %v450, %v453
          %vm455 = vcmp.lt.s32.totalorder %v454, 0
          %v456 = vsub.s32 0, %v454
          %v457 = vsel %vm455, %v456, %v454
          %v458 = vclz %v457
          %v459 = vsub.s32 %v458, 2
          %vm460 = vcmp.gt.s32.totalorder 0, %v459
          %v461 = vsel %vm460, 0, %v459
          %v462 = vsub.s32 32, %v461
          %v463 = vshll.u32 %v454, %v461
          %v464 = vshrl.u32 %v446, %v462
          %v465 = vor.u32 %v463, %v464
          %v466 = vsub.s32 4294967266, %v461
          %v467 = vadd.s32 %v466, 127
          %v468 = vshll.u32 %v467, 23
          %v469 = vor.u32 4788187, %v468
          %v470 = vand.u32 2147483647, %v469
          %v472 = vcvt.s32.f32 %v465
          %v473 = vmul.f32 %v472, %v470
          %v474 = vxor.u32 %v473, 2147483648
          %v475 = vsel %vm392, %v474, %v473
          %v476 = vsub.s32 4, %v452
          %v477 = vsel %vm392, %v476, %v452
          %v478 = vsel %vm391, %v387, %v475
          %v479 = vsel %vm391, 0, %v477
          %v480 = vcosq.f32.pop %v478
          %v481 = vsinq.f32.pop %v478
          %vm482 = vweird.f32 %v387
          %v483 = vand.u32 %v479, 3
          %vm484 = vcmp.lt.s32.totalorder %v483, 2
          %vm485 = vcmp.eq.s32.totalorder %v483, 0
          %v486 = vxor.u32 %v481, 2147483648
          %v487 = vsel %vm485, %v480, %v486
          %vm488 = vcmp.eq.s32.totalorder %v483, 2
          %v489 = vxor.u32 %v480, 2147483648
          %v490 = vsel %vm488, %v489, %v481
          %v491 = vsel %vm484, %v487, %v490
          %v492 = vsel %vm482, nan, %v491
          %493 = vst.msk [vmem:[#allocation2] sm:$0xff] %vm316, %v492
          %v494 = vand.u32 2147483647, %v387
          %vm495 = vcmp.le.f32.partialorder %v494, 0.7853982
          %vm496 = vcmp.lt.s32.totalorder %v387, 0
          %v497 = vand.u32 %v387, 2139095040
          %v498 = vshrl.u32 %v497, 23
          %v499 = vsub.s32 %v498, 127
          %v500 = vand.u32 2147483647, %v387
          %v501 = vand.u32 %v500, 8388607
          %v502 = vor.u32 %v501, 8388608
          %v503 = vsub.s32 0, %v502
          %v504 = vadd.s32 %v499, 1
          %vm505 = vcmp.gt.s32.totalorder %v504, 0
          %v506 = vsel %vm505, %v504, 0
          %v507 = vshrl.u32 %v506, 5
          %v508 = vand.u32 %v506, 31
          %v509 = vsub.s32 32, %v508
          %v510 = vshrl.u32 683565275, %v509
          %v511 = vshll.u32 683565275, %v508
          %v512 = vshrl.u32 2475754826, %v509
          %v513 = vor.u32 %v511, %v512
          %v514 = vshll.u32 2475754826, %v508
          %v515 = vshrl.u32 2131351028, %v509
          %v516 = vor.u32 %v514, %v515
          %v517 = vshll.u32 2131351028, %v508
          %v518 = vshrl.u32 2102212464, %v509
          %v519 = vor.u32 %v517, %v518
          %v520 = vshll.u32 2102212464, %v508
          %v521 = vshrl.u32 920167782, %v509
          %v522 = vor.u32 %v520, %v521
          %v523 = vshll.u32 920167782, %v508
          %v524 = vshrl.u32 1326507024, %v509
          %v525 = vor.u32 %v523, %v524
          %vm526 = vcmp.lt.s32.totalorder %v507, 1
          %vm527 = vcmp.lt.s32.totalorder %v507, 2
          %vm528 = vcmp.lt.s32.totalorder %v507, 3
          %vm529 = vcmp.lt.s32.totalorder %v507, 4
          %v530 = vsel %vm526, %v510, %v513
          %v531 = vsel %vm529, %v519, 2102212464
          %v532 = vsel %vm528, %v516, %v531
          %v533 = vsel %vm527, %v530, %v532
          %v534 = vsel %vm526, %v513, %v516
          %v535 = vsel %vm529, %v522, 920167782
          %v536 = vsel %vm528, %v519, %v535
          %v537 = vsel %vm527, %v534, %v536
          %v538 = vsel %vm526, %v516, %v519
          %v539 = vsel %vm529, %v525, 1326507024
          %v540 = vsel %vm528, %v522, %v539
          %v541 = vsel %vm527, %v538, %v540
          %v542 = vshll.u32 %v502, 8
          %v543 = vmul.u32.u64.compose %v542, %v541
          %v544 = vextract.low.u32 %v543
          %v545 = vextract.high.u32 %v543
          %v546 = vmul.u32.u64.compose %v542, %v537
          %v547 = vextract.low.u32 %v546
          %v548 = vextract.high.u32 %v546
          %v549 = vmul.u32 %v542, %v533
          %v550 = vadd.s32 %v545, %v547
          %vm551 = vc.u32 %v545, %v547
          %v552 = vadd.s32 %v548, 1
          %v553 = vsel %vm551, %v552, %v548
          %v554 = vadd.s32 %v549, %v553
          %v555 = vadd.s32 %v554, 536870912
          %v556 = vshrl.u32 %v555, 30
          %v557 = vshll.u32 %v556, 30
          %v558 = vsub.s32 %v554, %v557
          %vm559 = vcmp.lt.s32.totalorder %v558, 0
          %v560 = vsub.s32 0, %v558
          %v561 = vsel %vm559, %v560, %v558
          %v562 = vclz %v561
          %v563 = vsub.s32 %v562, 2
          %vm564 = vcmp.gt.s32.totalorder 0, %v563
          %v565 = vsel %vm564, 0, %v563
          %v566 = vsub.s32 32, %v565
          %v567 = vshll.u32 %v558, %v565
          %v568 = vshrl.u32 %v550, %v566
          %v569 = vor.u32 %v567, %v568
          %v570 = vsub.s32 4294967266, %v565
          %v571 = vadd.s32 %v570, 127
          %v572 = vshll.u32 %v571, 23
          %v573 = vor.u32 4788187, %v572
          %v574 = vand.u32 2147483647, %v573
          %v576 = vcvt.s32.f32 %v569
          %v577 = vmul.f32 %v576, %v574
          %v578 = vxor.u32 %v577, 2147483648
          %v579 = vsel %vm496, %v578, %v577
          %v580 = vsub.s32 4, %v556
          %v581 = vsel %vm496, %v580, %v556
          %v582 = vsel %vm495, %v387, %v579
          %v583 = vsel %vm495, 0, %v581
          %v584 = vcosq.f32.pop %v582
          %v585 = vsinq.f32.pop %v582
          %vm586 = vweird.f32 %v387
          %v587 = vadd.s32 %v583, 3
          %v588 = vand.u32 %v587, 3
          %vm589 = vcmp.lt.s32.totalorder %v588, 2
          %vm590 = vcmp.eq.s32.totalorder %v588, 0
          %v591 = vxor.u32 %v585, 2147483648
          %v592 = vsel %vm590, %v584, %v591
          %vm593 = vcmp.eq.s32.totalorder %v588, 2
          %v594 = vxor.u32 %v584, 2147483648
          %v595 = vsel %vm593, %v594, %v585
          %v596 = vsel %vm589, %v592, %v595
          %v597 = vsel %vm586, nan, %v596
          %598 = vst.msk [vmem:[#allocation3] sm:$0xff] %vm316, %v597
        $region40: #{layered_doe_forward.1} parent=35 // pred_fallthru
          _
        %v599 = vld [vmem:[#allocation2] sm:$0xff]
        %v600 = vld [vmem:[#allocation3] sm:$0xff]
        %v601 = vld [vmem:[%s300] sm:$0xff]
        %v602 = vld [vmem:[%s308] sm:$0xff]
        %v603 = vmul.f32 %v599, %v601
        %v604 = vmul.f32 %v600, %v602
        %v605 = vsub.f32 %v603, %v604
        %vm606 = vcmask 130048
        %607 = vst.msk [vmem:[%s281] sm:$0xff] %vm606, %v605
        %v608 = vmul.f32 %v600, %v601
        %v609 = vmul.f32 %v599, %v602
        %v610 = vadd.f32 %v608, %v609
        %611 = vst.msk [vmem:[%s288] sm:$0xff] %vm606, %v610
        %s612 = sand.u32 %s148, 1
        %s613 = scalar_lea.sflag [#allocation5], %s612
        %s614 = sand.u32 %s148, 1
        %s615 = smul.addr %s614, 8
        %s616 = scalar_lea.vmem [#allocation4], %s615
        %s617 = sand.u32 %s176, 1
        %s618 = scalar_lea.sflag [#allocation7], %s617
        %s619 = sand.u32 %s176, 1
        %s620 = smul.addr %s619, 8
        %s621 = scalar_lea.vmem [#allocation6], %s620
        // Predicated region
        $region41: #{layered_doe_forward.1} parent=35 // pred_check
          %p622 = pneg %p158
        $region42: #{layered_doe_forward.1} parent=35 // pred_check_branch
          %624 = sbr.rel (%p622) target = $region44
        $region43: #{layered_doe_forward.1} parent=35 // pred_region
          %s626 = ssub.s32 128, 128
          %627 = vsyncadd %s613, %s626
          %s628 = smul.addr %s28, 2
          %s629 = sadd.s32 %s27, %s628
          %s630 = smul.addr %s629, 128
          %s631 = scalar_lea.hbm %s4, %s630
          %s633 = sshll.u32 %s616, 4
          %s634 = int_to_ptr.vmem [resolvable:$true] %s633
          %636 = dma.vmem_to_hbm [thread:$0]  %s634, 128, %s631, %s613
        $region44: #{layered_doe_forward.1} parent=35 // pred_fallthru
          _
        // Predicated region
        $region45: #{layered_doe_forward.1} parent=35 // pred_check
          %p637 = pneg %p186
        $region46: #{layered_doe_forward.1} parent=35 // pred_check_branch
          %639 = sbr.rel (%p637) target = $region48
        $region47: #{layered_doe_forward.1} parent=35 // pred_region
          %s641 = ssub.s32 128, 128
          %642 = vsyncadd %s618, %s641
          %s643 = smul.addr %s28, 2
          %s644 = sadd.s32 %s27, %s643
          %s645 = smul.addr %s644, 128
          %s646 = scalar_lea.hbm %s5, %s645
          %s648 = sshll.u32 %s621, 4
          %s649 = int_to_ptr.vmem [resolvable:$true] %s648
          %651 = dma.vmem_to_hbm [thread:$0]  %s649, 128, %s646, %s618
        $region48: #{layered_doe_forward.1} parent=35 // pred_fallthru
          _
      $region36: #{layered_doe_forward.1} parent=5 // pred_fallthru
        _
      %p652 = scmp.le.s32.totalorder 2, %s18
      // Predicated region
      $region49: #{layered_doe_forward.1} parent=5 // pred_check
        %p653 = pneg %p652
      $region50: #{layered_doe_forward.1} parent=5 // pred_check_branch
        %655 = sbr.rel (%p653) target = $region52
      $region51: #{layered_doe_forward.1} parent=5 // pred_region
        %s656 = ssub.s32 %s18, 2
        // Predicated region
        $region53: #{layered_doe_forward.1} parent=51 // pred_check
          %p657 = pneg %p164
        $region54: #{layered_doe_forward.1} parent=51 // pred_check_branch
          %659 = sbr.rel (%p657) target = $region56
        $region55: #{layered_doe_forward.1} parent=51 // pred_region
          %s660 = sand.u32 %s149, 1
          %s661 = scalar_lea.sflag [#allocation5], %s660
          %s662 = sand.u32 %s149, 1
          %s663 = smul.addr %s662, 8
          %s664 = scalar_lea.vmem [#allocation4], %s663
          %665 = dma.done %s661, 128
        $region56: #{layered_doe_forward.1} parent=51 // pred_fallthru
          _
        // Predicated region
        $region57: #{layered_doe_forward.1} parent=51 // pred_check
          %p666 = pneg %p192
        $region58: #{layered_doe_forward.1} parent=51 // pred_check_branch
          %668 = sbr.rel (%p666) target = $region60
        $region59: #{layered_doe_forward.1} parent=51 // pred_region
          %s669 = sand.u32 %s177, 1
          %s670 = scalar_lea.sflag [#allocation7], %s669
          %s671 = sand.u32 %s177, 1
          %s672 = smul.addr %s671, 8
          %s673 = scalar_lea.vmem [#allocation6], %s672
          %674 = dma.done %s670, 128
        $region60: #{layered_doe_forward.1} parent=51 // pred_fallthru
          _
      $region52: #{layered_doe_forward.1} parent=5 // pred_fallthru
        _
    $region6: #{layered_doe_forward.1} parent=1 // loop_footer
      %s22 = sadd.s32 1, %s18
    $region7: #{layered_doe_forward.1} parent=1 // loop_footer_branch
      %17 = sbr.rel target = $region3
    $region8: #{layered_doe_forward.1} parent=1 // loop_exit
      _
    %675 = vsyncpa [#allocation5], 1
    %s676 = scalar_lea.sflag [#allocation5], 1
    %677 = vsyncpa %s676, 1
    %678 = vsyncpa [#allocation7], 1
    %s679 = scalar_lea.sflag [#allocation7], 1
    %680 = vsyncpa %s679, 1

</llo_original>
